<compile_context>
chip_gen: v7x
topology: tpu7x:2x2x1
jax: 0.10.0
libtpu: 0.0.40
codegen_flags: <defaults>
</compile_context>

<pallas_src>
import math
import functools

import jax
import jax.numpy as jnp
from jax.experimental import pallas as pl
from jax.experimental.pallas import tpu as pltpu


# ----------------------------- Pallas kernels ------------------------------ #

def _mlp_tail(rbf, h_emb, w_rbfcat_t_ref, b_in_ref, w_out_t_ref, b_out_ref,
              out_ref, hidden):
    """Feature-major tail: fused rbf/gate matmul, gated MLP, (hm, tile) store.

    rbf: (G, TE) f32, h_emb: (H, TE) f32.  Weights are pre-transposed
    (out_features, in_features) so every matmul is W^T @ x and the edge axis
    stays on lanes end to end (no transposes, unmasked lane-dense stores).
    """
    # One fused matmul for mlp.input(rbf-part) and gate_linear: (2H,G)@(G,TE).
    rg = jnp.dot(w_rbfcat_t_ref[...], rbf, preferred_element_type=jnp.float32)
    h = h_emb + rg[:hidden, :] + b_in_ref[...]            # (H, TE)
    gate = rg[hidden:, :]                                  # (H, TE)
    # TODO(synk): ResMLP source not provided; assumed gated 2-layer MLP:
    #   h = input(x); h = h * gate; h = silu(h); out = output(h)  (dropout=0 -> no-op)
    h = jax.nn.silu(h * gate)                              # f32 elementwise (v5e-safe)
    out_ref[...] = (jnp.dot(w_out_t_ref[...], h, preferred_element_type=jnp.float32)
                    + b_out_ref[...])                      # (hm, TE), lane-dense store


def _pair_embed_onehot_kernel(coeff, table_rows, hidden,
                              pid_ref, dist_ref, offs_ref,
                              table_h_t_ref, w_rbfcat_t_ref, b_in_ref,
                              w_out_t_ref, b_out_ref, out_ref):
    # pid_ref       : (1, TE)  int32 pair ids for this tile of edges
    # dist_ref      : (1, TE)  f32 distances
    # offs_ref      : (G, 1)   f32 Gaussian centers
    # table_h_t_ref : (H, T)   bf16 table pre-folded with mlp.input emb-part
    te = dist_ref.shape[1]
    diff = dist_ref[...] - offs_ref[...]                   # (G, TE)
    rbf = jnp.exp(coeff * (diff * diff))                   # GaussianSmearing, f32

    # In-VMEM embedding gather: bf16 one-hot (exact for 0/1), bf16 table,
    # f32 accumulation on the MXU.
    row_ids = jax.lax.broadcasted_iota(jnp.int32, (table_rows, te), 0)
    onehot = (row_ids == pid_ref[...]).astype(jnp.bfloat16)        # (T, TE)
    h_emb = jnp.dot(table_h_t_ref[...], onehot,
                    preferred_element_type=jnp.float32)            # (H, TE) f32

    _mlp_tail(rbf, h_emb, w_rbfcat_t_ref, b_in_ref, w_out_t_ref, b_out_ref,
              out_ref, hidden)


def _pair_embed_gathered_kernel(coeff, hidden,
                                dist_ref, hemb_ref, offs_ref,
                                w_rbfcat_t_ref, b_in_ref,
                                w_out_t_ref, b_out_ref, out_ref):
    # hemb_ref : (H, TE) bf16  pre-gathered rows of the pre-folded table
    diff = dist_ref[...] - offs_ref[...]
    rbf = jnp.exp(coeff * (diff * diff))
    h_emb = hemb_ref[...].astype(jnp.float32)              # elementwise stays f32
    _mlp_tail(rbf, h_emb, w_rbfcat_t_ref, b_in_ref, w_out_t_ref, b_out_ref,
              out_ref, hidden)


# ------------------------------ JAX wrapper -------------------------------- #

def _round_up(x, m):
    return ((x + m - 1) // m) * m


@functools.lru_cache(maxsize=None)
def _tensorcores_per_chip():
    """Best-effort TensorCores-per-chip query; only gates the tile split."""
    try:
        info = pltpu.get_tpu_info()
        for name in ("num_cores", "num_cores_per_chip", "tensorcore_count",
                     "num_tensorcores", "cores_per_chip"):
            v = getattr(info, name, None)
            if isinstance(v, int) and v >= 1:
                return v
    except Exception:
        pass
    try:
        if "v7" in jax.devices()[0].device_kind.lower():
            return 2
    except Exception:
        pass
    return 1


def pair_embed_forward(params, anum, edge_index, edge_to_src, dist, *,
                       num_elements, num_heads, num_masks,
                       num_gaussians, rbf_radius,
                       tile_e=2048, onehot_table_max_rows=256):
    embedding = params["embedding"]                     # (T, D)
    w_in_emb = params["w_in_emb"]                       # (D, H)
    w_in_rbf = params["w_in_rbf"]                       # (G, H)
    w_gate = params["w_gate"]                           # (G, H)
    b_in = params["b_in"]                               # (1, H)
    w_out = params["w_out"]                             # (H, hm)
    b_out = params["b_out"]                             # (1, hm)

    hidden = w_in_emb.shape[1]
    hm = num_heads * num_masks
    table_rows = num_elements * num_elements

    # ---- glue: pair ids (tiny integer indexing stays in XLA) ----
    pair_id = anum[edge_index[0]] + num_elements * anum[edge_index[1]]
    if edge_to_src is not None:
        pair_id = pair_id[edge_to_src]
    e_out = dist.shape[0]

    # ---- tile selection: one big tile amortizes per-step overhead; only force
    #      a >=2-tile split when the chip has >=2 TensorCores (v7x). ----
    e128 = _round_up(max(e_out, 1), 128)
    tile = _round_up(min(tile_e, e128), 128)
    if _tensorcores_per_chip() >= 2 and 256 <= e128 <= tile:
        tile = _round_up(e128 // 2, 128)
    e_pad = _round_up(e_out, tile)
    grid = (e_pad // tile,)

    # Per-edge scalars ship as (1, E): lane-dense, ~128x less VMEM than (E, 1).
    dist_p = jnp.pad(dist.astype(jnp.float32),
                     (0, e_pad - e_out)).reshape(1, e_pad)

    # GaussianSmearing setup.
    # TODO(synk): GaussianSmearing source not provided; assumed unnormalized
    # exp(-0.5 * ((d - mu_k) / delta)^2) with linspace centers on [0, rbf_radius].
    offsets = jnp.linspace(0.0, rbf_radius, num_gaussians,
                           dtype=jnp.float32).reshape(num_gaussians, 1)
    delta = rbf_radius / (num_gaussians - 1)
    coeff = -0.5 / (delta * delta)

    # Pre-transposed weights: every in-kernel matmul is W^T @ x (edges on lanes).
    w_rbfcat_t = jnp.concatenate([w_in_rbf, w_gate], axis=1).T   # (2H, G)
    b_in_c = b_in.reshape(hidden, 1)
    w_out_t = w_out.T                                            # (hm, H)
    b_out_c = b_out.reshape(hm, 1)

    # Fold the emb-part of mlp.input into the table once (f32, HIGHEST); the
    # per-edge path then only ever touches H-wide embedding rows.
    table_h_t = jnp.dot(embedding.astype(jnp.float32),
                        w_in_emb.astype(jnp.float32),
                        precision=jax.lax.Precision.HIGHEST).T   # (H, T) f32

    rep = lambda i: (0, 0)        # replicated (weight) blocks
    edge_map = lambda i: (0, i)   # edge axis on lanes

    use_onehot = table_rows <= onehot_table_max_rows
    if use_onehot:
        # Small table stays VMEM-resident; gather = bf16 one-hot MXU matmul.
        pid_p = jnp.pad(pair_id.astype(jnp.int32),
                        (0, e_pad - e_out)).reshape(1, e_pad)
        kernel = functools.partial(_pair_embed_onehot_kernel,
                                   coeff, table_rows, hidden)
        inputs = (pid_p, dist_p, offsets, table_h_t.astype(jnp.bfloat16),
                  w_rbfcat_t, b_in_c, w_out_t, b_out_c)
        in_specs = [
            pl.BlockSpec((1, tile), edge_map),               # pair ids
            pl.BlockSpec((1, tile), edge_map),               # dist
            pl.BlockSpec((num_gaussians, 1), rep),           # offsets
            pl.BlockSpec((hidden, table_rows), rep),         # folded table^T (bf16)
            pl.BlockSpec((2 * hidden, num_gaussians), rep),  # [W_in_rbf|W_gate]^T
            pl.BlockSpec((hidden, 1), rep),                  # b_in
            pl.BlockSpec((hm, hidden), rep),                 # W_out^T
            pl.BlockSpec((hm, 1), rep),                      # b_out
        ]
    else:
        # Large table: XLA gathers pre-folded bf16 rows directly in (H, E)
        # layout; no in-kernel emb matmul, no w_in_emb DMA, halved HBM stream.
        hemb_t = jnp.take(table_h_t.astype(jnp.bfloat16), pair_id, axis=1)
        hemb_p = jnp.pad(hemb_t, ((0, 0), (0, e_pad - e_out)))  # (H, e_pad)
        kernel = functools.partial(_pair_embed_gathered_kernel, coeff, hidden)
        inputs = (dist_p, hemb_p, offsets,
                  w_rbfcat_t, b_in_c, w_out_t, b_out_c)
        in_specs = [
            pl.BlockSpec((1, tile), edge_map),               # dist
            pl.BlockSpec((hidden, tile), edge_map),          # gathered h_emb (bf16)
            pl.BlockSpec((num_gaussians, 1), rep),           # offsets
            pl.BlockSpec((2 * hidden, num_gaussians), rep),  # [W_in_rbf|W_gate]^T
            pl.BlockSpec((hidden, 1), rep),                  # b_in
            pl.BlockSpec((hm, hidden), rep),                 # W_out^T
            pl.BlockSpec((hm, 1), rep),                      # b_out
        ]

    out_t = pl.pallas_call(
        kernel,
        out_shape=jax.ShapeDtypeStruct((hm, e_pad), jnp.float32),
        grid_spec=pltpu.PrefetchScalarGridSpec(
            num_scalar_prefetch=0,
            grid=grid,
            in_specs=in_specs,
            out_specs=pl.BlockSpec((hm, tile), lambda i: (0, i)),
        ),
        compiler_params=pltpu.CompilerParams(dimension_semantics=("parallel",)),
    )(*inputs)

    # out_t[f, e] with f = head * num_masks + mask (matches torch's
    # reshape(E, num_heads, num_masks)); edge axis stays the fast dim.
    att = out_t[:, :e_out].reshape(num_heads, num_masks, e_out)
    return jnp.transpose(att, (1, 0, 2))                   # (num_masks, num_heads, E)


# --------------------------- pure-JAX reference ----------------------------- #

def pair_embed_reference(params, anum, edge_index, edge_to_src, dist, *,
                         num_elements, num_heads, num_masks,
                         num_gaussians, rbf_radius):
    hp = jax.lax.Precision.HIGHEST
    offsets = jnp.linspace(0.0, rbf_radius, num_gaussians, dtype=jnp.float32)
    delta = rbf_radius / (num_gaussians - 1)
    coeff = -0.5 / (delta * delta)
    rbf = jnp.exp(coeff * (dist.astype(jnp.float32)[:, None] - offsets[None, :]) ** 2)

    pair_id = anum[edge_index[0]] + num_elements * anum[edge_index[1]]
    emb = params["embedding"][pair_id]
    if edge_to_src is not None:
        emb = emb[edge_to_src]

    gate = jnp.dot(rbf, params["w_gate"], precision=hp)
    h = (jnp.dot(emb, params["w_in_emb"], precision=hp)
         + jnp.dot(rbf, params["w_in_rbf"], precision=hp)
         + params["b_in"])
    h = jax.nn.silu(h * gate)
    out = jnp.dot(h, params["w_out"], precision=hp) + params["b_out"]

    att = out.reshape(dist.shape[0], num_heads, num_masks)
    return jnp.transpose(att, (2, 1, 0))


# ---------------------------- parameter init -------------------------------- #

def init_params(key, *, num_elements, embed_dim, hidden_dim,
                num_heads, num_masks, num_gaussians):
    ks = jax.random.split(key, 7)
    hm = num_heads * num_masks
    in_dim = embed_dim + num_gaussians

    b_emb_part = math.sqrt(3.0 / embed_dim)              # from reset_parameters
    b_rbf_part = math.sqrt(3.0 / 2.50663)                # sqrt(3 / sqrt(2*pi))
    b_in_bias = 1.0 / math.sqrt(in_dim)                  # PyTorch Linear default
    b_out = 1.0 / math.sqrt(hidden_dim)

    return {
        "embedding": jax.random.normal(ks[0], (num_elements ** 2, embed_dim), jnp.float32),
        "w_in_emb": jax.random.uniform(ks[1], (embed_dim, hidden_dim), jnp.float32,
                                       -b_emb_part, b_emb_part),
        "w_in_rbf": jax.random.uniform(ks[2], (num_gaussians, hidden_dim), jnp.float32,
                                       -b_rbf_part, b_rbf_part),
        "b_in": jax.random.uniform(ks[3], (1, hidden_dim), jnp.float32,
                                   -b_in_bias, b_in_bias),
        "w_gate": jax.random.uniform(ks[4], (num_gaussians, hidden_dim), jnp.float32,
                                     -b_rbf_part, b_rbf_part),
        "w_out": jax.random.uniform(ks[5], (hidden_dim, hm), jnp.float32, -b_out, b_out),
        "b_out": jax.random.uniform(ks[6], (1, hm), jnp.float32, -b_out, b_out),
    }


# --------------------------------- main ------------------------------------ #

if __name__ == "__main__":
    num_elements = 10
    embed_dim = 32
    hidden_dim = 32
    num_heads = 8
    num_masks = 1
    num_gaussians = 16
    rbf_radius = 12.0

    n_atoms = 8
    n_edges = 12
    n_edges_out = 20     # len(dist) == len(edge_to_src)

    key = jax.random.PRNGKey(0)
    k_par, k_anum, k_ei, k_src, k_dist = jax.random.split(key, 5)

    params = init_params(k_par, num_elements=num_elements, embed_dim=embed_dim,
                         hidden_dim=hidden_dim, num_heads=num_heads,
                         num_masks=num_masks, num_gaussians=num_gaussians)

    anum = jax.random.randint(k_anum, (n_atoms,), 0, num_elements, dtype=jnp.int32)
    edge_index = jax.random.randint(k_ei, (2, n_edges), 0, n_atoms, dtype=jnp.int32)
    edge_to_src = jax.random.randint(k_src, (n_edges_out,), 0, n_edges, dtype=jnp.int32)
    dist = jax.random.uniform(k_dist, (n_edges_out,), jnp.float32, 0.0, rbf_radius)

    cfg = dict(num_elements=num_elements, num_heads=num_heads, num_masks=num_masks,
               num_gaussians=num_gaussians, rbf_radius=rbf_radius)

    # Path A: in-kernel bf16 one-hot gather (small pair table, VMEM-resident).
    out_a = jax.block_until_ready(
        pair_embed_forward(params, anum, edge_index, edge_to_src, dist, **cfg))

    # Path B: large-table fallback (XLA gather of pre-folded bf16 rows), forced.
    out_b = jax.block_until_ready(
        pair_embed_forward(params, anum, edge_index, edge_to_src, dist,
                           onehot_table_max_rows=0, **cfg))

    ref = pair_embed_reference(params, anum, edge_index, edge_to_src, dist, **cfg)

    assert out_a.shape == (num_masks, num_heads, n_edges_out), out_a.shape
    assert out_a.dtype == jnp.float32
    assert out_b.shape == out_a.shape
    assert bool(jnp.all(jnp.isfinite(out_a))) and bool(jnp.all(jnp.isfinite(out_b)))
    assert float(jnp.max(jnp.abs(out_a - ref))) < 1e-1    # bf16 folded-table path
    assert float(jnp.max(jnp.abs(out_b - ref))) < 1.5e-1  # bf16 gathered-row path

    print("KERNEL_OK")
</pallas_src>

<mosaic_0001>
module attributes {stable_mosaic.version = 11 : i64} {
  func.func @_pair_embed_onehot_kernel(%arg0: i32, %arg1: memref<1x128xi32, #tpu.memory_space<vmem>>, %arg2: memref<1x128xf32, #tpu.memory_space<vmem>>, %arg3: memref<16x1xf32, #tpu.memory_space<vmem>>, %arg4: memref<32x100xbf16, #tpu.memory_space<vmem>>, %arg5: memref<64x16xf32, #tpu.memory_space<vmem>>, %arg6: memref<32x1xf32, #tpu.memory_space<vmem>>, %arg7: memref<8x32xf32, #tpu.memory_space<vmem>>, %arg8: memref<8x1xf32, #tpu.memory_space<vmem>>, %arg9: memref<8x128xf32, #tpu.memory_space<vmem>>) attributes {dimension_semantics = [#tpu.dimension_semantics<parallel>], iteration_bounds = array<i64: 1>, scalar_prefetch = 0 : i64, scratch_operands = 0 : i64, tpu.core_type = #tpu.core_type<tc>, window_params = [{transform_indices = @transform_0, window_bounds = array<i64: 1, 128>}, {transform_indices = @transform_1, window_bounds = array<i64: 1, 128>}, {pipeline_mode = #tpu.pipeline_mode<synchronous>, transform_indices = @transform_2, window_bounds = array<i64: 16, 1>}, {pipeline_mode = #tpu.pipeline_mode<synchronous>, transform_indices = @transform_3, window_bounds = array<i64: 32, 100>}, {pipeline_mode = #tpu.pipeline_mode<synchronous>, transform_indices = @transform_4, window_bounds = array<i64: 64, 16>}, {pipeline_mode = #tpu.pipeline_mode<synchronous>, transform_indices = @transform_5, window_bounds = array<i64: 32, 1>}, {pipeline_mode = #tpu.pipeline_mode<synchronous>, transform_indices = @transform_6, window_bounds = array<i64: 8, 32>}, {pipeline_mode = #tpu.pipeline_mode<synchronous>, transform_indices = @transform_7, window_bounds = array<i64: 8, 1>}, {transform_indices = @transform_8, window_bounds = array<i64: 8, 128>}]} {
    %c0 = arith.constant 0 : index
    %c0_0 = arith.constant 0 : index
    %0 = vector.load %arg2[%c0, %c0_0] : memref<1x128xf32, #tpu.memory_space<vmem>>, vector<1x128xf32>
    %c0_1 = arith.constant 0 : index
    %c0_2 = arith.constant 0 : index
    %1 = vector.load %arg3[%c0_1, %c0_2] : memref<16x1xf32, #tpu.memory_space<vmem>>, vector<16x1xf32>
    %2 = vector.broadcast %0 : vector<1x128xf32> to vector<16x128xf32>
    %3 = vector.broadcast %1 : vector<16x1xf32> to vector<16x128xf32>
    %4 = arith.subf %2, %3 : vector<16x128xf32>
    %5 = arith.mulf %4, %4 : vector<16x128xf32>
    %cst = arith.constant -7.812500e-01 : f32
    %6 = vector.broadcast %cst : f32 to vector<16x128xf32>
    %7 = arith.mulf %6, %5 : vector<16x128xf32>
    %8 = math.exp %7 : vector<16x128xf32>
    %9 = tpu.iota {dimensions = array<i32: 0>} : vector<100x128xi32>
    %c0_3 = arith.constant 0 : index
    %c0_4 = arith.constant 0 : index
    %10 = vector.load %arg1[%c0_3, %c0_4] : memref<1x128xi32, #tpu.memory_space<vmem>>, vector<1x128xi32>
    %11 = vector.broadcast %10 : vector<1x128xi32> to vector<100x128xi32>
    %12 = arith.cmpi eq, %9, %11 : vector<100x128xi32>
    %13 = arith.extui %12 : vector<100x128xi1> to vector<100x128xi32>
    %14 = arith.sitofp %13 : vector<100x128xi32> to vector<100x128xf32>
    %15 = arith.truncf %14 : vector<100x128xf32> to vector<100x128xbf16>
    %c0_5 = arith.constant 0 : index
    %c0_6 = arith.constant 0 : index
    %16 = vector.load %arg4[%c0_5, %c0_6] : memref<32x100xbf16, #tpu.memory_space<vmem>>, vector<32x100xbf16>
    %cst_7 = arith.constant dense<0.000000e+00> : vector<32x128xf32>
    %17 = tpu.matmul %16, %15, %cst_7 {dimension_numbers = #tpu.dot_dimension_numbers<[1], [0], [0], [1], [0, 0, 1, 1], [], []>} : vector<32x100xbf16>, vector<100x128xbf16>, vector<32x128xf32> -> vector<32x128xf32>
    %c0_8 = arith.constant 0 : index
    %c0_9 = arith.constant 0 : index
    %18 = vector.load %arg5[%c0_8, %c0_9] : memref<64x16xf32, #tpu.memory_space<vmem>>, vector<64x16xf32>
    %cst_10 = arith.constant dense<0.000000e+00> : vector<64x128xf32>
    %19 = tpu.matmul %18, %8, %cst_10 {dimension_numbers = #tpu.dot_dimension_numbers<[1], [0], [0], [1], [0, 0, 1, 1], [], []>} : vector<64x16xf32>, vector<16x128xf32>, vector<64x128xf32> -> vector<64x128xf32>
    %20 = vector.extract_strided_slice %19 {offsets = [0, 0], sizes = [32, 128], strides = [1, 1]} : vector<64x128xf32> to vector<32x128xf32>
    %21 = arith.addf %17, %20 : vector<32x128xf32>
    %c0_11 = arith.constant 0 : index
    %c0_12 = arith.constant 0 : index
    %22 = vector.load %arg6[%c0_11, %c0_12] : memref<32x1xf32, #tpu.memory_space<vmem>>, vector<32x1xf32>
    %23 = vector.broadcast %22 : vector<32x1xf32> to vector<32x128xf32>
    %24 = arith.addf %21, %23 : vector<32x128xf32>
    %25 = vector.extract_strided_slice %19 {offsets = [32, 0], sizes = [32, 128], strides = [1, 1]} : vector<64x128xf32> to vector<32x128xf32>
    %26 = arith.mulf %24, %25 : vector<32x128xf32>
    %27 = arith.negf %26 : vector<32x128xf32>
    %28 = math.exp %27 : vector<32x128xf32>
    %cst_13 = arith.constant 1.000000e+00 : f32
    %29 = vector.broadcast %cst_13 : f32 to vector<32x128xf32>
    %30 = arith.addf %29, %28 : vector<32x128xf32>
    %31 = arith.divf %29, %30 : vector<32x128xf32>
    %32 = arith.mulf %26, %31 : vector<32x128xf32>
    %c0_14 = arith.constant 0 : index
    %c0_15 = arith.constant 0 : index
    %33 = vector.load %arg7[%c0_14, %c0_15] : memref<8x32xf32, #tpu.memory_space<vmem>>, vector<8x32xf32>
    %cst_16 = arith.constant dense<0.000000e+00> : vector<8x128xf32>
    %34 = tpu.matmul %33, %32, %cst_16 {dimension_numbers = #tpu.dot_dimension_numbers<[1], [0], [0], [1], [0, 0, 1, 1], [], []>} : vector<8x32xf32>, vector<32x128xf32>, vector<8x128xf32> -> vector<8x128xf32>
    %c0_17 = arith.constant 0 : index
    %c0_18 = arith.constant 0 : index
    %35 = vector.load %arg8[%c0_17, %c0_18] : memref<8x1xf32, #tpu.memory_space<vmem>>, vector<8x1xf32>
    %36 = vector.broadcast %35 : vector<8x1xf32> to vector<8x128xf32>
    %37 = arith.addf %34, %36 : vector<8x128xf32>
    %c0_19 = arith.constant 0 : index
    %c0_20 = arith.constant 0 : index
    %38 = vector.load %arg9[%c0_19, %c0_20] : memref<8x128xf32, #tpu.memory_space<vmem>>, vector<8x128xf32>
    tpu.vector_store %arg9[%c0_19, %c0_20], %37 {strides = array<i32>} : memref<8x128xf32, #tpu.memory_space<vmem>>, vector<8x128xf32>,
    return
  }
  func.func @transform_0(%arg0: i32) -> (i32, i32) {
    %c0_i32 = arith.constant 0 : i32
    %c0_i32_0 = arith.constant 0 : i32
    return %c0_i32, %arg0 : i32, i32
  }
  func.func @transform_1(%arg0: i32) -> (i32, i32) {
    %c0_i32 = arith.constant 0 : i32
    %c0_i32_0 = arith.constant 0 : i32
    return %c0_i32, %arg0 : i32, i32
  }
  func.func @transform_2(%arg0: i32) -> (i32, i32) {
    %c0_i32 = arith.constant 0 : i32
    %c0_i32_0 = arith.constant 0 : i32
    %c0_i32_1 = arith.constant 0 : i32
    return %c0_i32, %c0_i32_0 : i32, i32
  }
  func.func @transform_3(%arg0: i32) -> (i32, i32) {
    %c0_i32 = arith.constant 0 : i32
    %c0_i32_0 = arith.constant 0 : i32
    %c0_i32_1 = arith.constant 0 : i32
    return %c0_i32, %c0_i32_0 : i32, i32
  }
  func.func @transform_4(%arg0: i32) -> (i32, i32) {
    %c0_i32 = arith.constant 0 : i32
    %c0_i32_0 = arith.constant 0 : i32
    %c0_i32_1 = arith.constant 0 : i32
    return %c0_i32, %c0_i32_0 : i32, i32
  }
  func.func @transform_5(%arg0: i32) -> (i32, i32) {
    %c0_i32 = arith.constant 0 : i32
    %c0_i32_0 = arith.constant 0 : i32
    %c0_i32_1 = arith.constant 0 : i32
    return %c0_i32, %c0_i32_0 : i32, i32
  }
  func.func @transform_6(%arg0: i32) -> (i32, i32) {
    %c0_i32 = arith.constant 0 : i32
    %c0_i32_0 = arith.constant 0 : i32
    %c0_i32_1 = arith.constant 0 : i32
    return %c0_i32, %c0_i32_0 : i32, i32
  }
  func.func @transform_7(%arg0: i32) -> (i32, i32) {
    %c0_i32 = arith.constant 0 : i32
    %c0_i32_0 = arith.constant 0 : i32
    %c0_i32_1 = arith.constant 0 : i32
    return %c0_i32, %c0_i32_0 : i32, i32
  }
  func.func @transform_8(%arg0: i32) -> (i32, i32) {
    %c0_i32 = arith.constant 0 : i32
    %c0_i32_0 = arith.constant 0 : i32
    return %c0_i32, %arg0 : i32, i32
  }
}

</mosaic_0001>

<llo_original>
// kernel: tpu_custom_call.1
$region0: #{tpu_custom_call.1}
  #allocation0 [shape = 'u32[]', space=smem, size = 0x4, offset = 0x4, fixed_abs, tag = 'smem constant byte address 0x4 - core index']
  #allocation1 [shape = 'u32[144,128]{1,0:T(1,128)}', space=vmem, size = 0x12000, scoped, tag = 'internal scratch']
  %s0 = inlined_call_operand.vmem [shape: s32[1,128], index: 0, kind: input, shape index: {}]
  %s1 = inlined_call_operand.vmem [shape: f32[1,128], index: 1, kind: input, shape index: {}]
  %s2 = inlined_call_operand.vmem [shape: f32[16,1], index: 2, kind: input, shape index: {}]
  %s3 = inlined_call_operand.vmem [shape: bf16[32,100], index: 3, kind: input, shape index: {}]
  %s4 = inlined_call_operand.vmem [shape: f32[64,16], index: 4, kind: input, shape index: {}]
  %s5 = inlined_call_operand.vmem [shape: f32[32,1], index: 5, kind: input, shape index: {}]
  %s6 = inlined_call_operand.vmem [shape: f32[8,32], index: 6, kind: input, shape index: {}]
  %s7 = inlined_call_operand.vmem [shape: f32[8,1], index: 7, kind: input, shape index: {}]
  %s8 = inlined_call_operand.hbm [shape: f32[8,128], index: 8, kind: output, shape index: {}]
  %s9 = sld [smem:[#allocation0]]
  $region42: #{tpu_custom_call.1} parent=0
    _
  %s11 = ssub.s32 1, %s9
  %s12 = scalar_select 0, %s11, %s9
  $region1: #{tpu_custom_call.1} parent=0
    #allocation2 [shape = 'u8[4096]{0}', space=vmem, size = 0x1000, scoped, tag = 'output window, operand 0, single buffered']
    #allocation3 [shape = 's32[1]{0}', space=sflag, size = 0x4, scoped, tag = 'scoped memory for tpu_custom_call.1']
    %13 = vsyncpa [#allocation3], 0
    // Predicated region
    $region2: #{tpu_custom_call.1} parent=1 // pred_check
      _
    $region3: #{tpu_custom_call.1} parent=1 // pred_check_branch
      %15 = sbr.rel (0) target = $region5
    $region4: #{tpu_custom_call.1} parent=1 // pred_region
      _
    $region5: #{tpu_custom_call.1} parent=1 // pred_fallthru
      _
    // Predicated region
    $region6: #{tpu_custom_call.1} parent=1 // pred_check
      _
    $region7: #{tpu_custom_call.1} parent=1 // pred_check_branch
      %17 = sbr.rel (0) target = $region9
    $region8: #{tpu_custom_call.1} parent=1 // pred_region
      _
    $region9: #{tpu_custom_call.1} parent=1 // pred_fallthru
      _
    // Predicated region
    $region10: #{tpu_custom_call.1} parent=1 // pred_check
      _
    $region11: #{tpu_custom_call.1} parent=1 // pred_check_branch
      %19 = sbr.rel (0) target = $region13
    $region12: #{tpu_custom_call.1} parent=1 // pred_region
      _
    $region13: #{tpu_custom_call.1} parent=1 // pred_fallthru
      _
    // Predicated region
    $region14: #{tpu_custom_call.1} parent=1 // pred_check
      _
    $region15: #{tpu_custom_call.1} parent=1 // pred_check_branch
      %21 = sbr.rel (0) target = $region17
    $region16: #{tpu_custom_call.1} parent=1 // pred_region
      _
    $region17: #{tpu_custom_call.1} parent=1 // pred_fallthru
      _
    // Predicated region
    $region18: #{tpu_custom_call.1} parent=1 // pred_check
      _
    $region19: #{tpu_custom_call.1} parent=1 // pred_check_branch
      %23 = sbr.rel (0) target = $region21
    $region20: #{tpu_custom_call.1} parent=1 // pred_region
      _
    $region21: #{tpu_custom_call.1} parent=1 // pred_fallthru
      _
    // Predicated region
    $region22: #{tpu_custom_call.1} parent=1 // pred_check
      _
    $region23: #{tpu_custom_call.1} parent=1 // pred_check_branch
      %25 = sbr.rel (0) target = $region25
    $region24: #{tpu_custom_call.1} parent=1 // pred_region
      _
    $region25: #{tpu_custom_call.1} parent=1 // pred_fallthru
      _
    // Predicated region
    $region26: #{tpu_custom_call.1} parent=1 // pred_check
      _
    $region27: #{tpu_custom_call.1} parent=1 // pred_check_branch
      %27 = sbr.rel (0) target = $region29
    $region28: #{tpu_custom_call.1} parent=1 // pred_region
      _
    $region29: #{tpu_custom_call.1} parent=1 // pred_fallthru
      _
    // Predicated region
    $region30: #{tpu_custom_call.1} parent=1 // pred_check
      _
    $region31: #{tpu_custom_call.1} parent=1 // pred_check_branch
      %29 = sbr.rel (0) target = $region33
    $region32: #{tpu_custom_call.1} parent=1 // pred_region
      _
    $region33: #{tpu_custom_call.1} parent=1 // pred_fallthru
      _
    %v31 = vld [vmem:[%s1] sm:$0x1]
    %v32 = vld [vmem:[%s2] sm:$0xff]
    %v33 = vld [vmem:[%s2 + $0x8] sm:$0xff]
    %v35 = vlaneseq
    %v36 = vshrl.u32 %v35, 7
    %v37 = vsub.s32 0, %v36
    %v38 = vrot.slane %v31, %v37
    %41 = vset.pattern.permute.xlu0 0
    %42 = vperm.xlu0 %41, %v32
    %v43 = vpop.permute.xlu0 %42
    %46 = vset.pattern.permute.xlu0 0
    %47 = vperm.xlu0 %46, %v33
    %v48 = vpop.permute.xlu0 %47
    %v50 = vsub.f32 %v38, %v43
    %v51 = vsub.f32 %v38, %v48
    %v52 = vmul.f32 %v50, %v50
    %v53 = vmul.f32 %v51, %v51
    %v54 = vmul.f32 %v52, -0.78125
    %v55 = vmul.f32 %v53, -0.78125
    %v56 = vmul.f32 %v54, 1.442695
    %v57 = vpow.pop %v56
    %v58 = vmul.f32 %v55, 1.442695
    %v59 = vpow.pop %v58
    %v60 = vlaneseq
    %v61 = vshrl.u32 %v60, 7
    %v62 = vadd.s32 %v61, 8
    %v63 = vadd.s32 %v61, 16
    %v64 = vadd.s32 %v61, 24
    %v65 = vadd.s32 %v61, 32
    %v66 = vadd.s32 %v61, 40
    %v67 = vadd.s32 %v61, 48
    %v68 = vadd.s32 %v61, 56
    %v69 = vadd.s32 %v61, 64
    %v70 = vadd.s32 %v61, 72
    %v71 = vadd.s32 %v61, 80
    %v72 = vadd.s32 %v61, 88
    %v73 = vadd.s32 %v61, 96
    %v74 = vld [vmem:[%s0] sm:$0x1]
    %v75 = vlaneseq
    %v76 = vshrl.u32 %v75, 7
    %v77 = vsub.s32 0, %v76
    %v78 = vrot.slane %v74, %v77
    %vm79 = vcmp.eq.s32.totalorder %v61, %v78
    %vm80 = vcmp.eq.s32.totalorder %v62, %v78
    %vm81 = vcmp.eq.s32.totalorder %v63, %v78
    %vm82 = vcmp.eq.s32.totalorder %v64, %v78
    %vm83 = vcmp.eq.s32.totalorder %v65, %v78
    %vm84 = vcmp.eq.s32.totalorder %v66, %v78
    %vm85 = vcmp.eq.s32.totalorder %v67, %v78
    %vm86 = vcmp.eq.s32.totalorder %v68, %v78
    %vm87 = vcmp.eq.s32.totalorder %v69, %v78
    %vm88 = vcmp.eq.s32.totalorder %v70, %v78
    %vm89 = vcmp.eq.s32.totalorder %v71, %v78
    %vm90 = vcmp.eq.s32.totalorder %v72, %v78
    %vm91 = vcmp.eq.s32.totalorder %v73, %v78
    %v92 = vsel %vm79, 1, 0
    %v93 = vsel %vm80, 1, 0
    %v94 = vsel %vm81, 1, 0
    %v95 = vsel %vm82, 1, 0
    %v96 = vsel %vm83, 1, 0
    %v97 = vsel %vm84, 1, 0
    %v98 = vsel %vm85, 1, 0
    %v99 = vsel %vm86, 1, 0
    %v100 = vsel %vm87, 1, 0
    %v101 = vsel %vm88, 1, 0
    %v102 = vsel %vm89, 1, 0
    %v103 = vsel %vm90, 1, 0
    %v104 = vsel %vm91, 1, 0
    %v105 = vcvt.s32.f32 %v92
    %v106 = vcvt.s32.f32 %v93
    %v107 = vcvt.s32.f32 %v94
    %v108 = vcvt.s32.f32 %v95
    %v109 = vcvt.s32.f32 %v96
    %v110 = vcvt.s32.f32 %v97
    %v111 = vcvt.s32.f32 %v98
    %v112 = vcvt.s32.f32 %v99
    %v113 = vcvt.s32.f32 %v100
    %v114 = vcvt.s32.f32 %v101
    %v115 = vcvt.s32.f32 %v102
    %v116 = vcvt.s32.f32 %v103
    %v117 = vcvt.s32.f32 %v104
    %v118 = vpack.c.bf16 %v106, %v105
    %v119 = vpack.c.bf16 %v108, %v107
    %v120 = vpack.c.bf16 %v110, %v109
    %v121 = vpack.c.bf16 %v112, %v111
    %v122 = vpack.c.bf16 %v114, %v113
    %v123 = vpack.c.bf16 %v116, %v115
    %v124 = vpack.c.bf16 %v117, %v117
    %v125 = vld [vmem:[%s3] sm:$0xf]
    %v126 = vld [vmem:[%s3 + $0x4] sm:$0xf]
    %v127 = vld [vmem:[%s3 + $0x8] sm:$0xf]
    %v128 = vld [vmem:[%s3 + $0xc] sm:$0xf]
    %v129 = vld [vmem:[%s4] sm:$0xff]
    %v130 = vld [vmem:[%s4 + $0x8] sm:$0xff]
    %v131 = vld [vmem:[%s4 + $0x10] sm:$0xff]
    %v132 = vld [vmem:[%s4 + $0x18] sm:$0xff]
    %v133 = vld [vmem:[%s4 + $0x20] sm:$0xff]
    %v134 = vld [vmem:[%s4 + $0x28] sm:$0xff]
    %v135 = vld [vmem:[%s4 + $0x30] sm:$0xff]
    %v136 = vld [vmem:[%s4 + $0x38] sm:$0xff]
    %vm137 = vcmask 130048
    %v139 = vsel %vm137, %v129, 0
    %v142 = vsel %vm137, %v130, 0
    %v145 = vsel %vm137, %v131, 0
    %v148 = vsel %vm137, %v132, 0
    %v151 = vsel %vm137, %v133, 0
    %v154 = vsel %vm137, %v134, 0
    %v157 = vsel %vm137, %v135, 0
    %v160 = vsel %vm137, %v136, 0
    %162 = vmatprep.subr.mxu0 0.0
    %163 = vmatpush1.msra.mxu0 %v57
    %164 = vmatprep.subr.mxu0 0.0
    %165 = vmatpush1.msra.mxu0 %v59
    %166 = vmatprep.subr.mxu0 0.0
    %167 = vmatpush1.msra.mxu0 0.0
    %168 = vmatprep.subr.mxu0 0.0
    %169 = vmatpush1.msra.mxu0 0.0
    %170 = vmatprep.subr.mxu0 0.0
    %171 = vmatpush1.msra.mxu0 0.0
    %172 = vmatprep.subr.mxu0 0.0
    %173 = vmatpush1.msra.mxu0 0.0
    %174 = vmatprep.subr.mxu0 0.0
    %175 = vmatpush1.msra.mxu0 0.0
    %176 = vmatprep.subr.mxu0 0.0
    %177 = vmatpush1.msra.mxu0 0.0
    %178 = vmatprep.subr.mxu0 0.0
    %179 = vmatpush1.msra.mxu0 0.0
    %180 = vmatprep.subr.mxu0 0.0
    %181 = vmatpush1.msra.mxu0 0.0
    %182 = vmatprep.subr.mxu0 0.0
    %183 = vmatpush1.msra.mxu0 0.0
    %184 = vmatprep.subr.mxu0 0.0
    %185 = vmatpush1.msra.mxu0 0.0
    %186 = vmatprep.subr.mxu0 0.0
    %187 = vmatpush1.msra.mxu0 0.0
    %188 = vmatprep.subr.mxu0 0.0
    %189 = vmatpush1.msra.mxu0 0.0
    %190 = vmatprep.subr.mxu0 0.0
    %191 = vmatpush1.msra.mxu0 0.0
    %192 = vmatprep.subr.mxu0 0.0
    %193 = vmatpush1.msra.mxu0 0.0
    %194 = vmatprep.subr.mxu0 0.0
    %195 = vmatpush1.msra.mxu0 0.0
    %196 = vmatprep.subr.mxu0 0.0
    %197 = vmatpush1.msra.mxu0 0.0
    %198 = vmatprep.subr.mxu0 0.0
    %199 = vmatpush1.msra.mxu0 0.0
    %200 = vmatprep.subr.mxu0 0.0
    %201 = vmatpush1.msra.mxu0 0.0
    %202 = vmatprep.subr.mxu0 0.0
    %203 = vmatpush1.msra.mxu0 0.0
    %204 = vmatprep.subr.mxu0 0.0
    %205 = vmatpush1.msra.mxu0 0.0
    %206 = vmatprep.subr.mxu0 0.0
    %207 = vmatpush1.msra.mxu0 0.0
    %208 = vmatprep.subr.mxu0 0.0
    %209 = vmatpush1.msra.mxu0 0.0
    %210 = vmatprep.subr.mxu0 0.0
    %211 = vmatpush1.msra.mxu0 0.0
    %212 = vmatprep.subr.mxu0 0.0
    %213 = vmatpush1.msra.mxu0 0.0
    %214 = vmatprep.subr.mxu0 0.0
    %215 = vmatpush1.msra.mxu0 0.0
    %216 = vmatprep.subr.mxu0 0.0
    %217 = vmatpush1.msra.mxu0 0.0
    %218 = vmatprep.subr.mxu0 0.0
    %219 = vmatpush1.msra.mxu0 0.0
    %220 = vmatprep.subr.mxu0 0.0
    %221 = vmatpush1.msra.mxu0 0.0
    %222 = vmatprep.subr.mxu0 0.0
    %223 = vmatpush1.msra.mxu0 0.0
    %224 = vmatprep.subr.mxu0 0.0
    %225 = vmatpush1.msra.mxu0 0.0
    %226 = vmatprep.mubr.f32.mxu0 0.0
    %227 = vmatmul.mubr.f32.gmra.mrb[0].mxu0 %v139
    %v228 = vpop.f32.mrb[0].mxu0
    %v229 = vadd.f32 0.0, %v228
    %v230 = vpop.f32.mrb[0].mxu0
    %231 = vmatprep.mubr.f32.mxu0 0.0
    %232 = vmatmul.mubr.f32.gmra.mrb[0].mxu0 %v142
    %v233 = vpop.f32.mrb[0].mxu0
    %v234 = vadd.f32 0.0, %v233
    %v235 = vpop.f32.mrb[0].mxu0
    %236 = vmatprep.mubr.f32.mxu0 0.0
    %237 = vmatmul.mubr.f32.gmra.mrb[0].mxu0 %v145
    %v238 = vpop.f32.mrb[0].mxu0
    %v239 = vadd.f32 0.0, %v238
    %v240 = vpop.f32.mrb[0].mxu0
    %241 = vmatprep.mubr.f32.mxu0 0.0
    %242 = vmatmul.mubr.f32.gmra.mrb[0].mxu0 %v148
    %v243 = vpop.f32.mrb[0].mxu0
    %v244 = vadd.f32 0.0, %v243
    %v245 = vpop.f32.mrb[0].mxu0
    %246 = vmatprep.mubr.f32.mxu0 0.0
    %247 = vmatmul.mubr.f32.gmra.mrb[0].mxu0 %v151
    %v248 = vpop.f32.mrb[0].mxu0
    %v249 = vadd.f32 0.0, %v248
    %v250 = vpop.f32.mrb[0].mxu0
    %251 = vmatprep.mubr.f32.mxu0 0.0
    %252 = vmatmul.mubr.f32.gmra.mrb[0].mxu0 %v154
    %v253 = vpop.f32.mrb[0].mxu0
    %v254 = vadd.f32 0.0, %v253
    %v255 = vpop.f32.mrb[0].mxu0
    %256 = vmatprep.mubr.f32.mxu0 0.0
    %257 = vmatmul.mubr.f32.gmra.mrb[0].mxu0 %v157
    %v258 = vpop.f32.mrb[0].mxu0
    %v259 = vadd.f32 0.0, %v258
    %v260 = vpop.f32.mrb[0].mxu0
    %261 = vmatprep.mubr.f32.mxu0 0.0
    %262 = vmatmul.mubr.f32.gmra.mrb[0].mxu0 %v160
    %v263 = vpop.f32.mrb[0].mxu0
    %v264 = vadd.f32 0.0, %v263
    %v265 = vpop.f32.mrb[0].mxu0
    %266 = vdwg.mxu0
    %v271 = vunpack.c.l.b16 %v125
    %v272 = vunpack.c.l.b16 %v126
    %v273 = vunpack.c.l.b16 %v127
    %v274 = vunpack.c.l.b16 %v128
    %v275 = vpack.c.b16 %v272, %v271
    %v276 = vpack.c.b16 %v274, %v273
    %vm277 = vcmask 818176
    %v279 = vsel %vm277, %v275, 0
    %v282 = vsel %vm277, %v276, 0
    %vm284 = vcmask 1041408
    %v286 = vsel %vm284, %v124, 0
    %288 = vmatprep.subr.bf16.mxu0 0
    %289 = vmatpush1.bf16.msra.mxu0 %v118
    %290 = vmatprep.subr.bf16.mxu0 0
    %291 = vmatpush1.bf16.msra.mxu0 %v119
    %292 = vmatprep.subr.bf16.mxu0 0
    %293 = vmatpush1.bf16.msra.mxu0 %v120
    %294 = vmatprep.subr.bf16.mxu0 0
    %295 = vmatpush1.bf16.msra.mxu0 %v121
    %296 = vmatprep.subr.bf16.mxu0 0
    %297 = vmatpush1.bf16.msra.mxu0 %v122
    %298 = vmatprep.subr.bf16.mxu0 0
    %299 = vmatpush1.bf16.msra.mxu0 %v123
    %300 = vmatprep.subr.bf16.mxu0 0
    %301 = vmatpush1.bf16.msra.mxu0 %v286
    %302 = vmatprep.subr.bf16.mxu0 0
    %303 = vmatpush1.bf16.msra.mxu0 0
    %304 = vmatprep.subr.bf16.mxu0 0
    %305 = vmatpush1.bf16.msra.mxu0 0
    %306 = vmatprep.subr.bf16.mxu0 0
    %307 = vmatpush1.bf16.msra.mxu0 0
    %308 = vmatprep.subr.bf16.mxu0 0
    %309 = vmatpush1.bf16.msra.mxu0 0
    %310 = vmatprep.subr.bf16.mxu0 0
    %311 = vmatpush1.bf16.msra.mxu0 0
    %312 = vmatprep.subr.bf16.mxu0 0
    %313 = vmatpush1.bf16.msra.mxu0 0
    %314 = vmatprep.subr.bf16.mxu0 0
    %315 = vmatpush1.bf16.msra.mxu0 0
    %316 = vmatprep.subr.bf16.mxu0 0
    %317 = vmatpush1.bf16.msra.mxu0 0
    %318 = vmatprep.subr.bf16.mxu0 0
    %319 = vmatpush1.bf16.msra.mxu0 0
    %320 = vmatprep.mubr.bf16.mxu0 0
    %321 = vmatmul.mubr.bf16.gmra.mrb[0].mxu0 %v279
    %v322 = vpop.f32.mrb[0].mxu0
    %v323 = vadd.f32 %v229, %v322
    %v324 = vpop.f32.mrb[0].mxu0
    %v325 = vpop.f32.mrb[0].mxu0
    %v326 = vadd.f32 %v234, %v325
    %v327 = vpop.f32.mrb[0].mxu0
    %328 = vmatprep.mubr.bf16.mxu0 0
    %329 = vmatmul.mubr.bf16.gmra.mrb[0].mxu0 %v282
    %v330 = vpop.f32.mrb[0].mxu0
    %v331 = vadd.f32 %v239, %v330
    %v332 = vpop.f32.mrb[0].mxu0
    %v333 = vpop.f32.mrb[0].mxu0
    %v334 = vadd.f32 %v244, %v333
    %v335 = vpop.f32.mrb[0].mxu0
    %336 = vdwg.mxu0
    %v337 = vld [vmem:[%s5] sm:$0xff]
    %v338 = vld [vmem:[%s5 + $0x8] sm:$0xff]
    %v339 = vld [vmem:[%s5 + $0x10] sm:$0xff]
    %v340 = vld [vmem:[%s5 + $0x18] sm:$0xff]
    %342 = vset.pattern.permute.xlu0 0
    %343 = vperm.xlu0 %342, %v337
    %v344 = vpop.permute.xlu0 %343
    %347 = vset.pattern.permute.xlu0 0
    %348 = vperm.xlu0 %347, %v338
    %v349 = vpop.permute.xlu0 %348
    %352 = vset.pattern.permute.xlu0 0
    %353 = vperm.xlu0 %352, %v339
    %v354 = vpop.permute.xlu0 %353
    %357 = vset.pattern.permute.xlu0 0
    %358 = vperm.xlu0 %357, %v340
    %v359 = vpop.permute.xlu0 %358
    %v361 = vadd.f32 %v323, %v344
    %v362 = vadd.f32 %v326, %v349
    %v363 = vadd.f32 %v331, %v354
    %v364 = vadd.f32 %v334, %v359
    %v365 = vmul.f32 %v361, %v249
    %v366 = vmul.f32 %v362, %v254
    %v367 = vmul.f32 %v363, %v259
    %v368 = vmul.f32 %v364, %v264
    %v369 = vxor.u32 %v365, 2147483648
    %v370 = vxor.u32 %v366, 2147483648
    %v371 = vxor.u32 %v367, 2147483648
    %v372 = vxor.u32 %v368, 2147483648
    %v373 = vmul.f32 %v369, 1.442695
    %v374 = vpow.pop %v373
    %v375 = vmul.f32 %v370, 1.442695
    %v376 = vpow.pop %v375
    %v377 = vmul.f32 %v371, 1.442695
    %v378 = vpow.pop %v377
    %v379 = vmul.f32 %v372, 1.442695
    %v380 = vpow.pop %v379
    %v381 = vadd.f32 %v374, 1.0
    %v382 = vadd.f32 %v376, 1.0
    %v383 = vadd.f32 %v378, 1.0
    %v384 = vadd.f32 %v380, 1.0
    %v385 = vrcp.pop %v381
    %v386 = vmul.f32 1.0, %v385
    %v387 = vrcp.pop %v382
    %v388 = vmul.f32 1.0, %v387
    %v389 = vrcp.pop %v383
    %v390 = vmul.f32 1.0, %v389
    %v391 = vrcp.pop %v384
    %v392 = vmul.f32 1.0, %v391
    %v393 = vmul.f32 %v365, %v386
    %v394 = vmul.f32 %v366, %v388
    %v395 = vmul.f32 %v367, %v390
    %v396 = vmul.f32 %v368, %v392
    %v397 = vld [vmem:[%s6] sm:$0xff]
    %v398 = vld [vmem:[%s7] sm:$0xff]
    %400 = vset.pattern.permute.xlu0 0
    %401 = vperm.xlu0 %400, %v398
    %v402 = vpop.permute.xlu0 %401
    %vm404 = vcmask 261120
    %v406 = vsel %vm404, %v397, 0
    %408 = vmatprep.subr.mxu0 0.0
    %409 = vmatpush1.msra.mxu0 %v393
    %410 = vmatprep.subr.mxu0 0.0
    %411 = vmatpush1.msra.mxu0 %v394
    %412 = vmatprep.subr.mxu0 0.0
    %413 = vmatpush1.msra.mxu0 %v395
    %414 = vmatprep.subr.mxu0 0.0
    %415 = vmatpush1.msra.mxu0 %v396
    %416 = vmatprep.subr.mxu0 0.0
    %417 = vmatpush1.msra.mxu0 0.0
    %418 = vmatprep.subr.mxu0 0.0
    %419 = vmatpush1.msra.mxu0 0.0
    %420 = vmatprep.subr.mxu0 0.0
    %421 = vmatpush1.msra.mxu0 0.0
    %422 = vmatprep.subr.mxu0 0.0
    %423 = vmatpush1.msra.mxu0 0.0
    %424 = vmatprep.subr.mxu0 0.0
    %425 = vmatpush1.msra.mxu0 0.0
    %426 = vmatprep.subr.mxu0 0.0
    %427 = vmatpush1.msra.mxu0 0.0
    %428 = vmatprep.subr.mxu0 0.0
    %429 = vmatpush1.msra.mxu0 0.0
    %430 = vmatprep.subr.mxu0 0.0
    %431 = vmatpush1.msra.mxu0 0.0
    %432 = vmatprep.subr.mxu0 0.0
    %433 = vmatpush1.msra.mxu0 0.0
    %434 = vmatprep.subr.mxu0 0.0
    %435 = vmatpush1.msra.mxu0 0.0
    %436 = vmatprep.subr.mxu0 0.0
    %437 = vmatpush1.msra.mxu0 0.0
    %438 = vmatprep.subr.mxu0 0.0
    %439 = vmatpush1.msra.mxu0 0.0
    %440 = vmatprep.subr.mxu0 0.0
    %441 = vmatpush1.msra.mxu0 0.0
    %442 = vmatprep.subr.mxu0 0.0
    %443 = vmatpush1.msra.mxu0 0.0
    %444 = vmatprep.subr.mxu0 0.0
    %445 = vmatpush1.msra.mxu0 0.0
    %446 = vmatprep.subr.mxu0 0.0
    %447 = vmatpush1.msra.mxu0 0.0
    %448 = vmatprep.subr.mxu0 0.0
    %449 = vmatpush1.msra.mxu0 0.0
    %450 = vmatprep.subr.mxu0 0.0
    %451 = vmatpush1.msra.mxu0 0.0
    %452 = vmatprep.subr.mxu0 0.0
    %453 = vmatpush1.msra.mxu0 0.0
    %454 = vmatprep.subr.mxu0 0.0
    %455 = vmatpush1.msra.mxu0 0.0
    %456 = vmatprep.subr.mxu0 0.0
    %457 = vmatpush1.msra.mxu0 0.0
    %458 = vmatprep.subr.mxu0 0.0
    %459 = vmatpush1.msra.mxu0 0.0
    %460 = vmatprep.subr.mxu0 0.0
    %461 = vmatpush1.msra.mxu0 0.0
    %462 = vmatprep.subr.mxu0 0.0
    %463 = vmatpush1.msra.mxu0 0.0
    %464 = vmatprep.subr.mxu0 0.0
    %465 = vmatpush1.msra.mxu0 0.0
    %466 = vmatprep.subr.mxu0 0.0
    %467 = vmatpush1.msra.mxu0 0.0
    %468 = vmatprep.subr.mxu0 0.0
    %469 = vmatpush1.msra.mxu0 0.0
    %470 = vmatprep.subr.mxu0 0.0
    %471 = vmatpush1.msra.mxu0 0.0
    %472 = vmatprep.mubr.f32.mxu0 0.0
    %473 = vmatmul.mubr.f32.gmra.mrb[0].mxu0 %v406
    %v474 = vpop.f32.mrb[0].mxu0
    %v475 = vadd.f32 %v402, %v474
    %v476 = vpop.f32.mrb[0].mxu0
    %477 = vdwg.mxu0
    %478 = vst [vmem:[#allocation2] sm:$0xff] %v475
    // Predicated region
    $region34: #{tpu_custom_call.1} parent=1 // pred_check
      _
    $region35: #{tpu_custom_call.1} parent=1 // pred_check_branch
      %480 = sbr.rel (0) target = $region37
    $region36: #{tpu_custom_call.1} parent=1 // pred_region
      %s482 = ssub.s32 128, 128
      %483 = vsyncadd [#allocation3], %s482
      %s485 = sshll.u32 [#allocation2], 4
      %s486 = int_to_ptr.vmem [resolvable:$true] %s485
      %488 = dma.vmem_to_hbm [thread:$0]  %s486, 128, %s8, [#allocation3]
    $region37: #{tpu_custom_call.1} parent=1 // pred_fallthru
      _
    // Predicated region
    $region38: #{tpu_custom_call.1} parent=1 // pred_check
      _
    $region39: #{tpu_custom_call.1} parent=1 // pred_check_branch
      %490 = sbr.rel (0) target = $region41
    $region40: #{tpu_custom_call.1} parent=1 // pred_region
      %491 = dma.done [#allocation3], 128
    $region41: #{tpu_custom_call.1} parent=1 // pred_fallthru
      _
    %492 = vsyncpa [#allocation3], 1

</llo_original>
